<compile_context>
chip_gen: v6e
topology: v6e:2x2x1
jax: 0.10.0
libtpu: 0.0.40
codegen_flags: <defaults>
</compile_context>

<pallas_src>
import functools

import jax
import jax.numpy as jnp
from jax.experimental import pallas as pl
from jax.experimental.pallas import tpu as pltpu


def _assoc_kernel(x_ref, o_ref):
    # x_ref: (P_in, TS, 128)   alpha tile (one batch element, planes 0..P-2)
    # o_ref: (P, L, TS, 128)   visibility output tile
    P = o_ref.shape[0]
    L = o_ref.shape[1]
    out_dtype = o_ref.dtype
    # Number of alpha planes the recurrence actually reads (last plane's
    # alpha is dropped by the exclusive cumprod).
    n_a = min(x_ref.shape[0], P - 1)

    # Per-plane (TS, 128) slabs: P is small, so a python loop is fine and
    # every elementwise op runs on dense, full-vreg slabs.  Math is f32.
    alpha = [jnp.maximum(x_ref[p].astype(jnp.float32), 0.0001)
             for p in range(n_a)]
    ones = jnp.ones(x_ref.shape[1:], dtype=jnp.float32)
    occ = [None] * P  # per-plane occlusion carried from the previous layer

    for l in range(L):
        if l > 0:
            # occlude alpha by the previous layer's occlusion
            alpha = [alpha[p] * occ[p] for p in range(n_a)]
        # exclusive cumulative product of (1 - alpha) over the plane axis,
        # written straight into the output block (no concatenate)
        vis_p = ones
        for p in range(P):
            if l == 0:
                # layer 0: occlusion is identically 1 -> skip the multiply
                o_ref[p, l, :, :] = vis_p.astype(out_dtype)
            else:
                o_ref[p, l, :, :] = (vis_p * occ[p]).astype(out_dtype)
            occ[p] = 1.0 - vis_p                 # occlusion for next layer
            if p < n_a:                          # advance exclusive cumprod
                om = 1.0 - alpha[p]
                vis_p = om if p == 0 else vis_p * om


def alpha2assoc_pallas(alpha_imgs, num_layers, tile_lanes=65536, out_dtype=None):
    """Pallas implementation of Alpha2Assoc.forward.

    alpha_imgs: float [B, P, D, H, W]
    num_layers: number of association layers L
    tile_lanes: target spatial lanes per grid step (HBM-traffic knob)
    out_dtype:  output dtype; pass jnp.bfloat16 to halve the dominant
                (Lx input-sized) write stream when downstream allows it.
    returns:    [B, P, num_layers * D, H, W]
    """
    B, P, D, H, W = alpha_imgs.shape
    L = num_layers
    out_dtype = jnp.dtype(alpha_imgs.dtype if out_dtype is None else out_dtype)
    N = D * H * W
    P_in = max(P - 1, 1)  # planes whose alpha is actually streamed in

    # ---- lane-dense layout: [B,P,D,H,W] -> [B,P,N] -> [B,P,n_sub,128] ------
    n_sub = pl.cdiv(N, 128)
    n128 = n_sub * 128
    x = alpha_imgs.reshape(B, P, N)
    if n128 != N:
        # Rare path (D*H*W not 128-divisible): pad the flattened spatial axis
        # to the next lane multiple only.  Padded lanes never mix with real
        # lanes (the recurrence is purely plane-wise) and are sliced off at
        # the end.  The common 128-divisible case is metadata-only.
        x = jnp.pad(x, ((0, 0), (0, 0), (0, n128 - N)))
    x = x.reshape(B, P, n_sub, 128)

    # ---- tile selection -----------------------------------------------------
    max_tile_sub = max(8, (tile_lanes // 128) // 8 * 8)
    tile_sub = n_sub if n_sub <= max_tile_sub else max_tile_sub
    tiles = pl.cdiv(n_sub, tile_sub)          # ragged last block is fine
    # Guarantee >= 2 grid steps when the spatial extent allows it so both
    # v7x TensorCores get work and DMA/compute can overlap tile-to-tile.
    if B * tiles < 2 and n_sub >= 16:
        tile_sub = ((pl.cdiv(n_sub, 2) + 7) // 8) * 8
        tiles = pl.cdiv(n_sub, tile_sub)

    # ---- VMEM budget (double-buffered blocks + f32 intermediates) ----------
    in_blk = P_in * tile_sub * 128 * x.dtype.itemsize
    out_blk = P * L * tile_sub * 128 * out_dtype.itemsize
    inter = (2 * P + 2) * tile_sub * 128 * 4     # alpha/occ lists, ones, vis_p
    vmem_needed = 2 * (in_blk + out_blk) + inter
    vmem_limit = None
    if vmem_needed > (12 << 20):
        # Only raise the scoped-VMEM limit when a large tile actually needs it
        # (16 MiB default on v5e); cap below any generation's physical VMEM.
        vmem_limit = min(int(1.5 * vmem_needed) + (2 << 20), 56 << 20)

    cost = pl.CostEstimate(
        flops=5 * L * B * P * N,
        transcendentals=0,
        bytes_accessed=B * P_in * N * x.dtype.itemsize
        + B * P * L * N * out_dtype.itemsize,
    )

    out = pl.pallas_call(
        _assoc_kernel,
        out_shape=jax.ShapeDtypeStruct((B, P, L, n_sub, 128), out_dtype),
        grid=(B, tiles),
        in_specs=[pl.BlockSpec((None, P_in, tile_sub, 128),
                               lambda b, i: (b, 0, i, 0))],
        out_specs=pl.BlockSpec((None, P, L, tile_sub, 128),
                               lambda b, i: (b, 0, 0, i, 0)),
        compiler_params=pltpu.CompilerParams(
            dimension_semantics=("parallel", "parallel"),
            vmem_limit_bytes=vmem_limit),
        cost_estimate=cost,
    )(x)

    # [B,P,L,n_sub,128] -> [B,P,L,n128] (metadata) -> (slice only if padded)
    vis = out.reshape(B, P, L, n128)
    if n128 != N:
        vis = vis[..., :N]
    return vis.reshape(B, P, L * D, H, W)


def alpha2assoc_ref(alpha_imgs, num_layers):
    """Plain-JAX mirror of the PyTorch forward, for verification."""
    alpha = jnp.maximum(alpha_imgs, 0.0001)
    ones = jnp.ones_like(alpha[:, :1])
    occ = ones
    vis_list = []
    for _ in range(num_layers):
        alpha = alpha * occ
        vis = jnp.cumprod(
            jnp.concatenate([ones, 1.0 - alpha[:, :-1]], axis=1), axis=1)
        vis_list.append(vis * occ)
        occ = 1.0 - vis
    return jnp.concatenate(vis_list, axis=2)


if __name__ == "__main__":
    k1, k2, k3 = jax.random.split(jax.random.PRNGKey(0), 3)

    # 1) B=2, P=4 planes, D=1, 16x16 spatial, L=3 — lane-aligned, f32 output.
    L1 = 3
    x1 = jax.random.uniform(k1, (2, 4, 1, 16, 16), dtype=jnp.float32)
    run1 = jax.jit(functools.partial(alpha2assoc_pallas, num_layers=L1))
    out1 = jax.block_until_ready(run1(x1))
    ref1 = alpha2assoc_ref(x1, L1)
    assert out1.shape == (2, 4, L1 * 1, 16, 16), out1.shape
    assert jnp.allclose(out1, ref1, atol=1e-6, rtol=1e-5), "case 1 mismatch"

    # 2) B=1, P=3, 48x48 (18 sublane rows): exercises the >=2-grid-step split
    #    and the ragged (non-tile-multiple) last block.
    L2 = 2
    x2 = jax.random.uniform(k2, (1, 3, 1, 48, 48), dtype=jnp.float32)
    out2 = jax.block_until_ready(
        jax.jit(functools.partial(alpha2assoc_pallas, num_layers=L2))(x2))
    ref2 = alpha2assoc_ref(x2, L2)
    assert out2.shape == (1, 3, L2 * 1, 48, 48), out2.shape
    assert jnp.allclose(out2, ref2, atol=1e-6, rtol=1e-5), "case 2 mismatch"

    # 3) bf16 output path (halves the dominant write stream); f32 math inside.
    out3 = jax.block_until_ready(
        jax.jit(functools.partial(alpha2assoc_pallas, num_layers=L1,
                                  out_dtype=jnp.bfloat16))(x1))
    assert out3.dtype == jnp.bfloat16
    assert jnp.allclose(out3.astype(jnp.float32), ref1, atol=1e-2, rtol=1e-2), \
        "case 3 mismatch"

    # 4) non-128-divisible spatial size (10x10): pad-to-128 fallback path.
    L4 = 2
    x4 = jax.random.uniform(k3, (2, 2, 1, 10, 10), dtype=jnp.float32)
    out4 = jax.block_until_ready(
        jax.jit(functools.partial(alpha2assoc_pallas, num_layers=L4))(x4))
    ref4 = alpha2assoc_ref(x4, L4)
    assert out4.shape == (2, 2, L4 * 1, 10, 10), out4.shape
    assert jnp.allclose(out4, ref4, atol=1e-6, rtol=1e-5), "case 4 mismatch"

    print("KERNEL_OK")
</pallas_src>

<mosaic_0001>
module attributes {stable_mosaic.version = 11 : i64} {
  func.func @_assoc_kernel(%arg0: i32, %arg1: i32, %arg2: memref<1x3x2x128xf32, #tpu.memory_space<vmem>>, %arg3: memref<1x4x3x2x128xf32, #tpu.memory_space<vmem>>) attributes {dimension_semantics = [#tpu.dimension_semantics<parallel>, #tpu.dimension_semantics<parallel>], iteration_bounds = array<i64: 2, 1>, scalar_prefetch = 0 : i64, scratch_operands = 0 : i64, tpu.core_type = #tpu.core_type<tc>, window_params = [{transform_indices = @transform_0, window_bounds = array<i64: 1, 3, 2, 128>}, {transform_indices = @transform_1, window_bounds = array<i64: 1, 4, 3, 2, 128>}]} {
    %c0 = arith.constant 0 : index
    %c0_0 = arith.constant 0 : index
    %c0_1 = arith.constant 0 : index
    %c0_2 = arith.constant 0 : index
    %0 = vector.load %arg2[%c0, %c0_0, %c0_1, %c0_2] : memref<1x3x2x128xf32, #tpu.memory_space<vmem>>, vector<1x1x2x128xf32>
    %1 = vector.shape_cast %0 : vector<1x1x2x128xf32> to vector<2x128xf32>
    %cst = arith.constant 9.99999974E-5 : f32
    %2 = vector.broadcast %cst : f32 to vector<2x128xf32>
    %3 = arith.maximumf %1, %2 : vector<2x128xf32>
    %c0_3 = arith.constant 0 : index
    %c1 = arith.constant 1 : index
    %c0_4 = arith.constant 0 : index
    %c0_5 = arith.constant 0 : index
    %4 = vector.load %arg2[%c0_3, %c1, %c0_4, %c0_5] : memref<1x3x2x128xf32, #tpu.memory_space<vmem>>, vector<1x1x2x128xf32>
    %5 = vector.shape_cast %4 : vector<1x1x2x128xf32> to vector<2x128xf32>
    %cst_6 = arith.constant 9.99999974E-5 : f32
    %6 = vector.broadcast %cst_6 : f32 to vector<2x128xf32>
    %7 = arith.maximumf %5, %6 : vector<2x128xf32>
    %c0_7 = arith.constant 0 : index
    %c2 = arith.constant 2 : index
    %c0_8 = arith.constant 0 : index
    %c0_9 = arith.constant 0 : index
    %8 = vector.load %arg2[%c0_7, %c2, %c0_8, %c0_9] : memref<1x3x2x128xf32, #tpu.memory_space<vmem>>, vector<1x1x2x128xf32>
    %9 = vector.shape_cast %8 : vector<1x1x2x128xf32> to vector<2x128xf32>
    %cst_10 = arith.constant 9.99999974E-5 : f32
    %10 = vector.broadcast %cst_10 : f32 to vector<2x128xf32>
    %11 = arith.maximumf %9, %10 : vector<2x128xf32>
    %cst_11 = arith.constant 1.000000e+00 : f32
    %12 = vector.broadcast %cst_11 : f32 to vector<2x128xf32>
    %c0_12 = arith.constant 0 : index
    %c0_13 = arith.constant 0 : index
    %c0_14 = arith.constant 0 : index
    %c0_15 = arith.constant 0 : index
    %c0_16 = arith.constant 0 : index
    %13 = vector.load %arg3[%c0_12, %c0_13, %c0_14, %c0_15, %c0_16] : memref<1x4x3x2x128xf32, #tpu.memory_space<vmem>>, vector<1x1x1x2x128xf32>
    %14 = vector.shape_cast %13 : vector<1x1x1x2x128xf32> to vector<2x128xf32>
    %15 = vector.shape_cast %12 : vector<2x128xf32> to vector<1x1x1x2x128xf32>
    tpu.vector_store %arg3[%c0_12, %c0_13, %c0_14, %c0_15, %c0_16], %15 {strides = array<i32>} : memref<1x4x3x2x128xf32, #tpu.memory_space<vmem>>, vector<1x1x1x2x128xf32>,
    %cst_17 = arith.constant 1.000000e+00 : f32
    %16 = vector.broadcast %cst_17 : f32 to vector<2x128xf32>
    %17 = arith.subf %16, %12 : vector<2x128xf32>
    %cst_18 = arith.constant 1.000000e+00 : f32
    %18 = vector.broadcast %cst_18 : f32 to vector<2x128xf32>
    %19 = arith.subf %18, %3 : vector<2x128xf32>
    %c0_19 = arith.constant 0 : index
    %c1_20 = arith.constant 1 : index
    %c0_21 = arith.constant 0 : index
    %c0_22 = arith.constant 0 : index
    %c0_23 = arith.constant 0 : index
    %20 = vector.load %arg3[%c0_19, %c1_20, %c0_21, %c0_22, %c0_23] : memref<1x4x3x2x128xf32, #tpu.memory_space<vmem>>, vector<1x1x1x2x128xf32>
    %21 = vector.shape_cast %20 : vector<1x1x1x2x128xf32> to vector<2x128xf32>
    %22 = vector.shape_cast %19 : vector<2x128xf32> to vector<1x1x1x2x128xf32>
    tpu.vector_store %arg3[%c0_19, %c1_20, %c0_21, %c0_22, %c0_23], %22 {strides = array<i32>} : memref<1x4x3x2x128xf32, #tpu.memory_space<vmem>>, vector<1x1x1x2x128xf32>,
    %cst_24 = arith.constant 1.000000e+00 : f32
    %23 = vector.broadcast %cst_24 : f32 to vector<2x128xf32>
    %24 = arith.subf %23, %19 : vector<2x128xf32>
    %cst_25 = arith.constant 1.000000e+00 : f32
    %25 = vector.broadcast %cst_25 : f32 to vector<2x128xf32>
    %26 = arith.subf %25, %7 : vector<2x128xf32>
    %27 = arith.mulf %19, %26 : vector<2x128xf32>
    %c0_26 = arith.constant 0 : index
    %c2_27 = arith.constant 2 : index
    %c0_28 = arith.constant 0 : index
    %c0_29 = arith.constant 0 : index
    %c0_30 = arith.constant 0 : index
    %28 = vector.load %arg3[%c0_26, %c2_27, %c0_28, %c0_29, %c0_30] : memref<1x4x3x2x128xf32, #tpu.memory_space<vmem>>, vector<1x1x1x2x128xf32>
    %29 = vector.shape_cast %28 : vector<1x1x1x2x128xf32> to vector<2x128xf32>
    %30 = vector.shape_cast %27 : vector<2x128xf32> to vector<1x1x1x2x128xf32>
    tpu.vector_store %arg3[%c0_26, %c2_27, %c0_28, %c0_29, %c0_30], %30 {strides = array<i32>} : memref<1x4x3x2x128xf32, #tpu.memory_space<vmem>>, vector<1x1x1x2x128xf32>,
    %cst_31 = arith.constant 1.000000e+00 : f32
    %31 = vector.broadcast %cst_31 : f32 to vector<2x128xf32>
    %32 = arith.subf %31, %27 : vector<2x128xf32>
    %cst_32 = arith.constant 1.000000e+00 : f32
    %33 = vector.broadcast %cst_32 : f32 to vector<2x128xf32>
    %34 = arith.subf %33, %11 : vector<2x128xf32>
    %35 = arith.mulf %27, %34 : vector<2x128xf32>
    %c0_33 = arith.constant 0 : index
    %c3 = arith.constant 3 : index
    %c0_34 = arith.constant 0 : index
    %c0_35 = arith.constant 0 : index
    %c0_36 = arith.constant 0 : index
    %36 = vector.load %arg3[%c0_33, %c3, %c0_34, %c0_35, %c0_36] : memref<1x4x3x2x128xf32, #tpu.memory_space<vmem>>, vector<1x1x1x2x128xf32>
    %37 = vector.shape_cast %36 : vector<1x1x1x2x128xf32> to vector<2x128xf32>
    %38 = vector.shape_cast %35 : vector<2x128xf32> to vector<1x1x1x2x128xf32>
    tpu.vector_store %arg3[%c0_33, %c3, %c0_34, %c0_35, %c0_36], %38 {strides = array<i32>} : memref<1x4x3x2x128xf32, #tpu.memory_space<vmem>>, vector<1x1x1x2x128xf32>,
    %cst_37 = arith.constant 1.000000e+00 : f32
    %39 = vector.broadcast %cst_37 : f32 to vector<2x128xf32>
    %40 = arith.subf %39, %35 : vector<2x128xf32>
    %41 = arith.mulf %3, %17 : vector<2x128xf32>
    %42 = arith.mulf %7, %24 : vector<2x128xf32>
    %43 = arith.mulf %11, %32 : vector<2x128xf32>
    %44 = arith.mulf %12, %17 : vector<2x128xf32>
    %c0_38 = arith.constant 0 : index
    %c0_39 = arith.constant 0 : index
    %c1_40 = arith.constant 1 : index
    %c0_41 = arith.constant 0 : index
    %c0_42 = arith.constant 0 : index
    %45 = vector.load %arg3[%c0_38, %c0_39, %c1_40, %c0_41, %c0_42] : memref<1x4x3x2x128xf32, #tpu.memory_space<vmem>>, vector<1x1x1x2x128xf32>
    %46 = vector.shape_cast %45 : vector<1x1x1x2x128xf32> to vector<2x128xf32>
    %47 = vector.shape_cast %44 : vector<2x128xf32> to vector<1x1x1x2x128xf32>
    tpu.vector_store %arg3[%c0_38, %c0_39, %c1_40, %c0_41, %c0_42], %47 {strides = array<i32>} : memref<1x4x3x2x128xf32, #tpu.memory_space<vmem>>, vector<1x1x1x2x128xf32>,
    %cst_43 = arith.constant 1.000000e+00 : f32
    %48 = vector.broadcast %cst_43 : f32 to vector<2x128xf32>
    %49 = arith.subf %48, %12 : vector<2x128xf32>
    %cst_44 = arith.constant 1.000000e+00 : f32
    %50 = vector.broadcast %cst_44 : f32 to vector<2x128xf32>
    %51 = arith.subf %50, %41 : vector<2x128xf32>
    %52 = arith.mulf %51, %24 : vector<2x128xf32>
    %c0_45 = arith.constant 0 : index
    %c1_46 = arith.constant 1 : index
    %c1_47 = arith.constant 1 : index
    %c0_48 = arith.constant 0 : index
    %c0_49 = arith.constant 0 : index
    %53 = vector.load %arg3[%c0_45, %c1_46, %c1_47, %c0_48, %c0_49] : memref<1x4x3x2x128xf32, #tpu.memory_space<vmem>>, vector<1x1x1x2x128xf32>
    %54 = vector.shape_cast %53 : vector<1x1x1x2x128xf32> to vector<2x128xf32>
    %55 = vector.shape_cast %52 : vector<2x128xf32> to vector<1x1x1x2x128xf32>
    tpu.vector_store %arg3[%c0_45, %c1_46, %c1_47, %c0_48, %c0_49], %55 {strides = array<i32>} : memref<1x4x3x2x128xf32, #tpu.memory_space<vmem>>, vector<1x1x1x2x128xf32>,
    %cst_50 = arith.constant 1.000000e+00 : f32
    %56 = vector.broadcast %cst_50 : f32 to vector<2x128xf32>
    %57 = arith.subf %56, %51 : vector<2x128xf32>
    %cst_51 = arith.constant 1.000000e+00 : f32
    %58 = vector.broadcast %cst_51 : f32 to vector<2x128xf32>
    %59 = arith.subf %58, %42 : vector<2x128xf32>
    %60 = arith.mulf %51, %59 : vector<2x128xf32>
    %61 = arith.mulf %60, %32 : vector<2x128xf32>
    %c0_52 = arith.constant 0 : index
    %c2_53 = arith.constant 2 : index
    %c1_54 = arith.constant 1 : index
    %c0_55 = arith.constant 0 : index
    %c0_56 = arith.constant 0 : index
    %62 = vector.load %arg3[%c0_52, %c2_53, %c1_54, %c0_55, %c0_56] : memref<1x4x3x2x128xf32, #tpu.memory_space<vmem>>, vector<1x1x1x2x128xf32>
    %63 = vector.shape_cast %62 : vector<1x1x1x2x128xf32> to vector<2x128xf32>
    %64 = vector.shape_cast %61 : vector<2x128xf32> to vector<1x1x1x2x128xf32>
    tpu.vector_store %arg3[%c0_52, %c2_53, %c1_54, %c0_55, %c0_56], %64 {strides = array<i32>} : memref<1x4x3x2x128xf32, #tpu.memory_space<vmem>>, vector<1x1x1x2x128xf32>,
    %cst_57 = arith.constant 1.000000e+00 : f32
    %65 = vector.broadcast %cst_57 : f32 to vector<2x128xf32>
    %66 = arith.subf %65, %60 : vector<2x128xf32>
    %cst_58 = arith.constant 1.000000e+00 : f32
    %67 = vector.broadcast %cst_58 : f32 to vector<2x128xf32>
    %68 = arith.subf %67, %43 : vector<2x128xf32>
    %69 = arith.mulf %60, %68 : vector<2x128xf32>
    %70 = arith.mulf %69, %40 : vector<2x128xf32>
    %c0_59 = arith.constant 0 : index
    %c3_60 = arith.constant 3 : index
    %c1_61 = arith.constant 1 : index
    %c0_62 = arith.constant 0 : index
    %c0_63 = arith.constant 0 : index
    %71 = vector.load %arg3[%c0_59, %c3_60, %c1_61, %c0_62, %c0_63] : memref<1x4x3x2x128xf32, #tpu.memory_space<vmem>>, vector<1x1x1x2x128xf32>
    %72 = vector.shape_cast %71 : vector<1x1x1x2x128xf32> to vector<2x128xf32>
    %73 = vector.shape_cast %70 : vector<2x128xf32> to vector<1x1x1x2x128xf32>
    tpu.vector_store %arg3[%c0_59, %c3_60, %c1_61, %c0_62, %c0_63], %73 {strides = array<i32>} : memref<1x4x3x2x128xf32, #tpu.memory_space<vmem>>, vector<1x1x1x2x128xf32>,
    %cst_64 = arith.constant 1.000000e+00 : f32
    %74 = vector.broadcast %cst_64 : f32 to vector<2x128xf32>
    %75 = arith.subf %74, %69 : vector<2x128xf32>
    %76 = arith.mulf %41, %49 : vector<2x128xf32>
    %77 = arith.mulf %42, %57 : vector<2x128xf32>
    %78 = arith.mulf %43, %66 : vector<2x128xf32>
    %79 = arith.mulf %12, %49 : vector<2x128xf32>
    %c0_65 = arith.constant 0 : index
    %c0_66 = arith.constant 0 : index
    %c2_67 = arith.constant 2 : index
    %c0_68 = arith.constant 0 : index
    %c0_69 = arith.constant 0 : index
    %80 = vector.load %arg3[%c0_65, %c0_66, %c2_67, %c0_68, %c0_69] : memref<1x4x3x2x128xf32, #tpu.memory_space<vmem>>, vector<1x1x1x2x128xf32>
    %81 = vector.shape_cast %80 : vector<1x1x1x2x128xf32> to vector<2x128xf32>
    %82 = vector.shape_cast %79 : vector<2x128xf32> to vector<1x1x1x2x128xf32>
    tpu.vector_store %arg3[%c0_65, %c0_66, %c2_67, %c0_68, %c0_69], %82 {strides = array<i32>} : memref<1x4x3x2x128xf32, #tpu.memory_space<vmem>>, vector<1x1x1x2x128xf32>,
    %cst_70 = arith.constant 1.000000e+00 : f32
    %83 = vector.broadcast %cst_70 : f32 to vector<2x128xf32>
    %84 = arith.subf %83, %76 : vector<2x128xf32>
    %85 = arith.mulf %84, %57 : vector<2x128xf32>
    %c0_71 = arith.constant 0 : index
    %c1_72 = arith.constant 1 : index
    %c2_73 = arith.constant 2 : index
    %c0_74 = arith.constant 0 : index
    %c0_75 = arith.constant 0 : index
    %86 = vector.load %arg3[%c0_71, %c1_72, %c2_73, %c0_74, %c0_75] : memref<1x4x3x2x128xf32, #tpu.memory_space<vmem>>, vector<1x1x1x2x128xf32>
    %87 = vector.shape_cast %86 : vector<1x1x1x2x128xf32> to vector<2x128xf32>
    %88 = vector.shape_cast %85 : vector<2x128xf32> to vector<1x1x1x2x128xf32>
    tpu.vector_store %arg3[%c0_71, %c1_72, %c2_73, %c0_74, %c0_75], %88 {strides = array<i32>} : memref<1x4x3x2x128xf32, #tpu.memory_space<vmem>>, vector<1x1x1x2x128xf32>,
    %cst_76 = arith.constant 1.000000e+00 : f32
    %89 = vector.broadcast %cst_76 : f32 to vector<2x128xf32>
    %90 = arith.subf %89, %77 : vector<2x128xf32>
    %91 = arith.mulf %84, %90 : vector<2x128xf32>
    %92 = arith.mulf %91, %66 : vector<2x128xf32>
    %c0_77 = arith.constant 0 : index
    %c2_78 = arith.constant 2 : index
    %c2_79 = arith.constant 2 : index
    %c0_80 = arith.constant 0 : index
    %c0_81 = arith.constant 0 : index
    %93 = vector.load %arg3[%c0_77, %c2_78, %c2_79, %c0_80, %c0_81] : memref<1x4x3x2x128xf32, #tpu.memory_space<vmem>>, vector<1x1x1x2x128xf32>
    %94 = vector.shape_cast %93 : vector<1x1x1x2x128xf32> to vector<2x128xf32>
    %95 = vector.shape_cast %92 : vector<2x128xf32> to vector<1x1x1x2x128xf32>
    tpu.vector_store %arg3[%c0_77, %c2_78, %c2_79, %c0_80, %c0_81], %95 {strides = array<i32>} : memref<1x4x3x2x128xf32, #tpu.memory_space<vmem>>, vector<1x1x1x2x128xf32>,
    %cst_82 = arith.constant 1.000000e+00 : f32
    %96 = vector.broadcast %cst_82 : f32 to vector<2x128xf32>
    %97 = arith.subf %96, %78 : vector<2x128xf32>
    %98 = arith.mulf %91, %97 : vector<2x128xf32>
    %99 = arith.mulf %98, %75 : vector<2x128xf32>
    %c0_83 = arith.constant 0 : index
    %c3_84 = arith.constant 3 : index
    %c2_85 = arith.constant 2 : index
    %c0_86 = arith.constant 0 : index
    %c0_87 = arith.constant 0 : index
    %100 = vector.load %arg3[%c0_83, %c3_84, %c2_85, %c0_86, %c0_87] : memref<1x4x3x2x128xf32, #tpu.memory_space<vmem>>, vector<1x1x1x2x128xf32>
    %101 = vector.shape_cast %100 : vector<1x1x1x2x128xf32> to vector<2x128xf32>
    %102 = vector.shape_cast %99 : vector<2x128xf32> to vector<1x1x1x2x128xf32>
    tpu.vector_store %arg3[%c0_83, %c3_84, %c2_85, %c0_86, %c0_87], %102 {strides = array<i32>} : memref<1x4x3x2x128xf32, #tpu.memory_space<vmem>>, vector<1x1x1x2x128xf32>,
    return
  }
  func.func @transform_0(%arg0: i32, %arg1: i32) -> (i32, i32, i32, i32) {
    %c0_i32 = arith.constant 0 : i32
    %c0_i32_0 = arith.constant 0 : i32
    %c0_i32_1 = arith.constant 0 : i32
    return %arg0, %c0_i32, %arg1, %c0_i32_0 : i32, i32, i32, i32
  }
  func.func @transform_1(%arg0: i32, %arg1: i32) -> (i32, i32, i32, i32, i32) {
    %c0_i32 = arith.constant 0 : i32
    %c0_i32_0 = arith.constant 0 : i32
    %c0_i32_1 = arith.constant 0 : i32
    %c0_i32_2 = arith.constant 0 : i32
    return %arg0, %c0_i32, %c0_i32_0, %arg1, %c0_i32_1 : i32, i32, i32, i32, i32
  }
}

</mosaic_0001>

<llo_original>
// kernel: alpha2assoc_pallas.1
$region0: #{alpha2assoc_pallas.1}
  #allocation0 [shape = 'u32[]', space=smem, size = 0x4, offset = 0x4, fixed_abs, tag = 'smem constant byte address 0x4 - core index']
  #allocation1 [shape = 'u32[144,128]{1,0:T(1,128)}', space=vmem, size = 0x12000, scoped, tag = 'internal scratch']
  %s0 = inlined_call_operand.vmem [shape: f32[2,4,2,128], index: 0, kind: input, shape index: {}]
  %s1 = inlined_call_operand.vmem [shape: f32[2,4,3,2,128], index: 1, kind: output, shape index: {}]
  %s2 = sld [smem:[#allocation0]]
  $region37: #{alpha2assoc_pallas.1} parent=0
    _
  %s4 = ssub.s32 1, %s2
  %s5 = scalar_select 0, %s4, %s2
  loop: start=0, step=1, limit=4
  $region2: #{alpha2assoc_pallas.1} parent=0 // loop_pre_header
    _
  $region3: #{alpha2assoc_pallas.1} parent=0 // loop_header
    %s7 = sphi 0, %s11
    %p8 = scmp.ge.s32.totalorder %s7, 4
    %s14 = sphi 0, %s26
    %s15 = sphi 0, %s22
    %s16 = sphi 0, %s14
    %s17 = sphi 0, %s15
    %s18 = sphi 0, %s16
    %s19 = sphi 0, %s17
    %s31 = sphi 0, %s33
    %s34 = sphi 0, %s31
    %s35 = sphi 0, %s34
    %s51 = sphi 0, %s35
    %s59 = sphi 0, %s61
    %s62 = sphi 0, %s59
    %s63 = sphi 0, %s62
    %s79 = sphi 0, %s63
  $region4: #{alpha2assoc_pallas.1} parent=0 // loop_header_branch
    %10 = sbr.rel (%p8) target = $region8
  $region5: #{alpha2assoc_pallas.1} parent=0 // loop_body
    %s12 = ssub.s32 %s7, 1
    %s13 = ssub.s32 %s7, 2
    %s20 = sadd.s32 1, %s15
    %p21 = scmp.ge.s32.totalorder %s20, 1
    %s22 = scalar_select %p21, 0, %s20
    %s23 = sadd.s32 1, %s14
    %s24 = scalar_select %p21, %s23, %s14
    %p25 = scmp.ge.s32.totalorder %s24, 2
    %s26 = scalar_select %p25, 0, %s24
    %s27 = ssub.s32 %s14, %s26
    %s28 = ssub.s32 %s15, %s22
    %s29 = sor.u32 %s27, %s28
    %p30 = scmp.eq.s32.totalorder %s29, 0
    %s32 = sadd.s32 %s31, 1
    %s33 = scalar_select %p30, %s31, %s32
    %p36 = pneg %p30
    %p37 = scmp.eq.s32.totalorder %s7, 1
    %p38 = por %p36, %p37
    %p39 = scmp.ne.s32.totalorder %s31, %s34
    %p40 = scmp.eq.s32.totalorder %s7, 0
    %p41 = por %p39, %p40
    %p42 = scmp.ne.s32.totalorder %s31, %s34
    %p43 = scmp.eq.s32.totalorder %s12, 1
    %p44 = por %p42, %p43
    %p45 = scmp.ne.s32.totalorder %s34, %s35
    %p46 = scmp.eq.s32.totalorder %s12, 0
    %p47 = por %p45, %p46
    %p48 = scmp.ne.s32.totalorder %s34, %s35
    %p49 = scmp.eq.s32.totalorder %s13, 1
    %p50 = por %p48, %p49
    %p52 = scmp.ne.s32.totalorder %s35, %s51
    %p53 = scmp.eq.s32.totalorder %s13, 0
    %p54 = por %p52, %p53
    %s55 = ssub.s32 %s14, %s26
    %s56 = ssub.s32 %s15, %s22
    %s57 = sor.u32 %s55, %s56
    %p58 = scmp.eq.s32.totalorder %s57, 0
    %s60 = sadd.s32 %s59, 1
    %s61 = scalar_select %p58, %s59, %s60
    %p64 = pneg %p58
    %p65 = scmp.eq.s32.totalorder %s7, 1
    %p66 = por %p64, %p65
    %p67 = scmp.ne.s32.totalorder %s59, %s62
    %p68 = scmp.eq.s32.totalorder %s7, 0
    %p69 = por %p67, %p68
    %p70 = scmp.ne.s32.totalorder %s59, %s62
    %p71 = scmp.eq.s32.totalorder %s12, 1
    %p72 = por %p70, %p71
    %p73 = scmp.ne.s32.totalorder %s62, %s63
    %p74 = scmp.eq.s32.totalorder %s12, 0
    %p75 = por %p73, %p74
    %p76 = scmp.ne.s32.totalorder %s62, %s63
    %p77 = scmp.eq.s32.totalorder %s13, 1
    %p78 = por %p76, %p77
    %p80 = scmp.ne.s32.totalorder %s63, %s79
    %p81 = scmp.eq.s32.totalorder %s13, 0
    %p82 = por %p80, %p81
    %p83 = scmp.le.s32.totalorder 1, %s7
    %p84 = scmp.lt.s32.totalorder %s7, 3
    %p85 = pnand %p83, %p84
    %p86 = pneg %p85
    // Predicated region
    $region9: #{alpha2assoc_pallas.1} parent=5 // pred_check
      _
    $region10: #{alpha2assoc_pallas.1} parent=5 // pred_check_branch
      %88 = sbr.rel (%p85) target = $region12
    $region11: #{alpha2assoc_pallas.1} parent=5 // pred_region
      %s89 = ssub.s32 %s7, 1
    $region12: #{alpha2assoc_pallas.1} parent=5 // pred_fallthru
      _
    %p90 = scmp.lt.s32.totalorder %s7, 2
    // Predicated region
    $region13: #{alpha2assoc_pallas.1} parent=5 // pred_check
      %p91 = pneg %p90
    $region14: #{alpha2assoc_pallas.1} parent=5 // pred_check_branch
      %93 = sbr.rel (%p91) target = $region16
    $region15: #{alpha2assoc_pallas.1} parent=5 // pred_region
      // Predicated region
      $region17: #{alpha2assoc_pallas.1} parent=15 // pred_check
        %p94 = pneg %p41
      $region18: #{alpha2assoc_pallas.1} parent=15 // pred_check_branch
        %96 = sbr.rel (%p94) target = $region20
      $region19: #{alpha2assoc_pallas.1} parent=15 // pred_region
        %p97 = scmp.lt.s32.totalorder %s14, 1
        %s98 = scalar_select %p97, %s14, 1
        %p99 = scmp.lt.s32.totalorder %s15, 0
        %s100 = scalar_select %p99, %s15, 0
        %s101 = smul.addr %s98, 4
        %s102 = sadd.s32 %s100, %s101
        %s103 = smul.addr %s102, 2
        %s104 = scalar_lea.vmem %s0, %s103
      $region20: #{alpha2assoc_pallas.1} parent=15 // pred_fallthru
        _
    $region16: #{alpha2assoc_pallas.1} parent=5 // pred_fallthru
      _
    %p105 = scmp.le.s32.totalorder 1, %s7
    %p106 = scmp.lt.s32.totalorder %s7, 3
    %p107 = pnand %p105, %p106
    %p108 = pneg %p107
    // Predicated region
    $region21: #{alpha2assoc_pallas.1} parent=5 // pred_check
      _
    $region22: #{alpha2assoc_pallas.1} parent=5 // pred_check_branch
      %110 = sbr.rel (%p107) target = $region24
    $region23: #{alpha2assoc_pallas.1} parent=5 // pred_region
      %s111 = ssub.s32 %s7, 1
      %p112 = scmp.lt.s32.totalorder %s16, 1
      %s113 = scalar_select %p112, %s16, 1
      %p114 = scmp.lt.s32.totalorder %s17, 0
      %s115 = scalar_select %p114, %s17, 0
      %s116 = smul.addr %s113, 4
      %s117 = sadd.s32 %s115, %s116
      %s118 = smul.addr %s117, 2
      %s119 = scalar_lea.vmem %s0, %s118
      %p120 = pneg %p47
      %p121 = pneg %p44
      %p122 = pneg %p75
      %p123 = pneg %p72
      %p124 = scmp.lt.s32.totalorder %s16, 1
      %s125 = scalar_select %p124, %s16, 1
      %p126 = scmp.lt.s32.totalorder %s17, 0
      %s127 = scalar_select %p126, %s17, 0
      %s128 = smul.addr %s125, 12
      %s129 = sadd.s32 %s127, %s128
      %s130 = smul.addr %s129, 2
      %s131 = scalar_lea.vmem %s1, %s130
      %p132 = scmp.lt.s32.totalorder %s16, 1
      %s133 = scalar_select %p132, %s16, 1
      %p134 = scmp.lt.s32.totalorder %s17, 0
      %s135 = scalar_select %p134, %s17, 0
      %s136 = smul.addr %s133, 4
      %s137 = sadd.s32 %s135, %s136
      %s138 = smul.addr %s137, 2
      %s139 = scalar_lea.vmem %s0, %s138
      %p140 = scmp.lt.s32.totalorder %s16, 1
      %s141 = scalar_select %p140, %s16, 1
      %p142 = scmp.lt.s32.totalorder %s17, 0
      %s143 = scalar_select %p142, %s17, 0
      %s144 = smul.addr %s141, 12
      %s145 = sadd.s32 %s143, %s144
      %s146 = smul.addr %s145, 2
      %s147 = scalar_lea.vmem %s1, %s146
      %v148 = vld [vmem:[%s139] sm:$0x3]
      %v149 = vmax.f32 %v148, 0.0001
      %s150 = scalar_lea.vmem %s139, 2
      %v151 = vld [vmem:[%s150] sm:$0x3]
      %v152 = vmax.f32 %v151, 0.0001
      %s153 = scalar_lea.vmem %s139, 4
      %v154 = vld [vmem:[%s153] sm:$0x3]
      %v155 = vmax.f32 %v154, 0.0001
      %156 = vst [vmem:[%s147] sm:$0x3] 1.0
      %v157 = vsub.f32 1.0, %v149
      %s158 = scalar_lea.vmem %s147, 6
      %159 = vst [vmem:[%s158] sm:$0x3] %v157
      %v160 = vsub.f32 1.0, %v157
      %v161 = vsub.f32 1.0, %v152
      %v162 = vmul.f32 %v157, %v161
      %s163 = scalar_lea.vmem %s147, 12
      %164 = vst [vmem:[%s163] sm:$0x3] %v162
      %v165 = vsub.f32 1.0, %v162
      %v166 = vsub.f32 1.0, %v155
      %v167 = vmul.f32 %v162, %v166
      %s168 = scalar_lea.vmem %s147, 18
      %169 = vst [vmem:[%s168] sm:$0x3] %v167
      %v170 = vsub.f32 1.0, %v167
      %v171 = vmul.f32 %v149, 0.0
      %v172 = vmul.f32 %v152, %v160
      %v173 = vmul.f32 %v155, %v165
      %s174 = scalar_lea.vmem %s147, 2
      %175 = vst [vmem:[%s174] sm:$0x3] 0.0
      %v176 = vsub.f32 1.0, %v171
      %v177 = vmul.f32 %v176, %v160
      %s178 = scalar_lea.vmem %s147, 8
      %179 = vst [vmem:[%s178] sm:$0x3] %v177
      %v180 = vsub.f32 1.0, %v176
      %v181 = vsub.f32 1.0, %v172
      %v182 = vmul.f32 %v176, %v181
      %v183 = vmul.f32 %v182, %v165
      %s184 = scalar_lea.vmem %s147, 14
      %185 = vst [vmem:[%s184] sm:$0x3] %v183
      %v186 = vsub.f32 1.0, %v182
      %v187 = vsub.f32 1.0, %v173
      %v188 = vmul.f32 %v182, %v187
      %v189 = vmul.f32 %v188, %v170
      %s190 = scalar_lea.vmem %s147, 20
      %191 = vst [vmem:[%s190] sm:$0x3] %v189
      %v192 = vsub.f32 1.0, %v188
      %v193 = vmul.f32 %v171, 0.0
      %v194 = vmul.f32 %v172, %v180
      %v195 = vmul.f32 %v173, %v186
      %s196 = scalar_lea.vmem %s147, 4
      %197 = vst [vmem:[%s196] sm:$0x3] 0.0
      %v198 = vsub.f32 1.0, %v193
      %v199 = vmul.f32 %v198, %v180
      %s200 = scalar_lea.vmem %s147, 10
      %201 = vst [vmem:[%s200] sm:$0x3] %v199
      %v202 = vsub.f32 1.0, %v194
      %v203 = vmul.f32 %v198, %v202
      %v204 = vmul.f32 %v203, %v186
      %s205 = scalar_lea.vmem %s147, 16
      %206 = vst [vmem:[%s205] sm:$0x3] %v204
      %v207 = vsub.f32 1.0, %v195
      %v208 = vmul.f32 %v203, %v207
      %v209 = vmul.f32 %v208, %v192
      %s210 = scalar_lea.vmem %s147, 22
      %211 = vst [vmem:[%s210] sm:$0x3] %v209
      %p212 = scmp.lt.s32.totalorder %s16, 1
      %s213 = scalar_select %p212, %s16, 1
      %p214 = scmp.lt.s32.totalorder %s17, 0
      %s215 = scalar_select %p214, %s17, 0
      %s216 = smul.addr %s213, 12
      %s217 = sadd.s32 %s215, %s216
      %s218 = smul.addr %s217, 2
      %s219 = scalar_lea.vmem %s1, %s218
      // Predicated region
      $region25: #{alpha2assoc_pallas.1} parent=23 // pred_check
        %p220 = pneg %p72
      $region26: #{alpha2assoc_pallas.1} parent=23 // pred_check_branch
        %222 = sbr.rel (%p220) target = $region28
      $region27: #{alpha2assoc_pallas.1} parent=23 // pred_region
        _
      $region28: #{alpha2assoc_pallas.1} parent=23 // pred_fallthru
        _
    $region24: #{alpha2assoc_pallas.1} parent=5 // pred_fallthru
      _
    %p223 = scmp.le.s32.totalorder 2, %s7
    // Predicated region
    $region29: #{alpha2assoc_pallas.1} parent=5 // pred_check
      %p224 = pneg %p223
    $region30: #{alpha2assoc_pallas.1} parent=5 // pred_check_branch
      %226 = sbr.rel (%p224) target = $region32
    $region31: #{alpha2assoc_pallas.1} parent=5 // pred_region
      %s227 = ssub.s32 %s7, 2
      // Predicated region
      $region33: #{alpha2assoc_pallas.1} parent=31 // pred_check
        %p228 = pneg %p78
      $region34: #{alpha2assoc_pallas.1} parent=31 // pred_check_branch
        %230 = sbr.rel (%p228) target = $region36
      $region35: #{alpha2assoc_pallas.1} parent=31 // pred_region
        %p231 = scmp.lt.s32.totalorder %s18, 1
        %s232 = scalar_select %p231, %s18, 1
        %p233 = scmp.lt.s32.totalorder %s19, 0
        %s234 = scalar_select %p233, %s19, 0
        %s235 = smul.addr %s232, 12
        %s236 = sadd.s32 %s234, %s235
        %s237 = smul.addr %s236, 2
        %s238 = scalar_lea.vmem %s1, %s237
      $region36: #{alpha2assoc_pallas.1} parent=31 // pred_fallthru
        _
    $region32: #{alpha2assoc_pallas.1} parent=5 // pred_fallthru
      _
  $region6: #{alpha2assoc_pallas.1} parent=0 // loop_footer
    %s11 = sadd.s32 1, %s7
  $region7: #{alpha2assoc_pallas.1} parent=0 // loop_footer_branch
    %6 = sbr.rel target = $region3
  $region8: #{alpha2assoc_pallas.1} parent=0 // loop_exit
    _

</llo_original>
